<compile_context>
chip_gen: v6e
topology: v6e:2x2x1
jax: 0.10.0
libtpu: 0.0.40
codegen_flags: <defaults>
</compile_context>

<pallas_src>
import functools

import jax
import jax.numpy as jnp
from jax import lax
from jax.experimental import pallas as pl
from jax.experimental.pallas import tpu as pltpu

_LOG_CUTOFF = 6.907755278982137      # log(1000), softplus overflow cutoff
_M_CHUNK = 128                       # lane-granule chunk of the grid axis M
_VMEM_BUDGET = 24 * 1024 * 1024      # block footprint budget; v7x (64 MiB) safe


def _round_up(x, m):
    return ((x + m - 1) // m) * m


def _gamma_gp_final_kernel(n_params, low_precision,
                           scale_ref, d_ref, h_ref, o_ref):
    # scale_ref: (1,)        SMEM  -- already -0.5 / ls**2
    # d_ref    : (p_tile, M) VMEM  -- squared distances, NATIVE layout (P rows)
    # h_ref    : (B*K, M)    VMEM  -- gridded weights, rows laid out b*K + k
    # o_ref    : (B*K, p_tile) VMEM -- output params (P lane-dense)
    M = d_ref.shape[1]
    scale = scale_ref[0]

    def chunk_matmul(lo, size):
        d_c = d_ref[:, pl.ds(lo, size)]                     # (p_tile, size)
        x = d_c.astype(jnp.float32) * scale
        if low_precision:
            # bf16 exp: ~2x EUP on v6e/v7x; v5e upcasts internally (no harm).
            ker = jnp.exp(x.astype(jnp.bfloat16))
        else:
            ker = jnp.exp(x)
        h_c = h_ref[:, pl.ds(lo, size)]                     # (B*K, size)
        # Contract h dim 1 with ker dim 1 (trans-B matmul) -> (B*K, p_tile);
        # avoids any transpose of the big distance tile.
        return lax.dot_general(
            h_c, ker,
            dimension_numbers=(((1,), (1,)), ((), ())),
            preferred_element_type=jnp.float32)

    # Accumulate straight into the output block (zeroed per P tile).
    o_ref[...] = jnp.zeros_like(o_ref)

    n_full = M // _M_CHUNK
    rem = M - n_full * _M_CHUNK
    if n_full > 0:
        def body(c, carry):
            lo = pl.multiple_of(c * _M_CHUNK, _M_CHUNK)
            o_ref[...] += chunk_matmul(lo, _M_CHUNK)
            return carry
        lax.fori_loop(0, n_full, body, 0, unroll=(n_full <= 8))
    if rem > 0:
        o_ref[...] += chunk_matmul(n_full * _M_CHUNK, rem)

    # ---- link functions ----------------------------------------------------
    params = o_ref[...]                                     # (B*K, p_tile) f32

    # Per-row parameter index (row = b*K + k); column mask, broadcast by where.
    k_idx = lax.broadcasted_iota(jnp.int32, (params.shape[0], 1), 0) % n_params
    is_sig = (k_idx == 0) | (k_idx == 2)

    # Sigmoid branch (param indices 0 and 2), clamped to [1e-5, 1-1e-5].
    denom = 1.0 + jnp.exp(-params)
    if low_precision:
        sig = pl.reciprocal(denom, approx=True)             # EUP slot, ~free
    else:
        sig = 1.0 / denom
    sig = jnp.clip(sig, 1e-5, 1.0 - 1e-5)

    # Force-positive branch (indices 1 and 3:): softplus with log(1000) cutoff
    # (single exp, no inf intermediates), scaled/shifted and clamped.
    safe = jnp.minimum(params, _LOG_CUTOFF)
    sp = jnp.where(params < _LOG_CUTOFF, jnp.log1p(jnp.exp(safe)), params)
    pos = jnp.clip(0.01 + (1.0 - 0.1) * sp, 1e-5, 100000.0)

    o_ref[...] = jnp.where(is_sig, sig, pos)


def _choose_p_tile(P, M, BK, requested, d_itemsize, h_itemsize):
    """Largest 128-multiple P tile fitting the VMEM budget, >=2 grid steps."""
    # Per-lane footprint: double-buffered dists block + double-buffered output
    # block + in-kernel exp chunk temp; fixed part: resident h block (2 bufs).
    per_lane = 2 * M * d_itemsize + 2 * BK * 4 + _M_CHUNK * 4
    fixed = 2 * BK * M * h_itemsize
    avail = max(_VMEM_BUDGET - fixed, per_lane * 128)
    max_tile = max(128, (avail // per_lane) // 128 * 128)

    p_tile = min(_round_up(max(requested, 1), 128), max_tile)
    p_tile = min(p_tile, _round_up(P, 128))          # never wider than needed
    if P > 128:
        # Guarantee >= 2 grid steps so the "parallel" P axis can be sharded
        # across v7x's two TensorCores (and megacore elsewhere).
        p_tile = min(p_tile, _round_up(pl.cdiv(P, 2), 128))
    return max(p_tile, 128)


def _vmem_limit_bytes(p_tile, M, BK, d_itemsize, h_itemsize):
    footprint = (2 * p_tile * M * d_itemsize        # dists block, 2 buffers
                 + 2 * BK * p_tile * 4              # output block, 2 buffers
                 + 2 * BK * M * h_itemsize          # resident h, 2 buffers
                 + p_tile * _M_CHUNK * 4)           # exp chunk temp
    return int(min(footprint + (16 << 20), 40 << 20))


def gamma_gp_final_layer(h, dists, init_ls, *, p_tile=2048, low_precision=False):
    """h: (B, I, J, K) f32, dists: (P, I, J) squared dists, init_ls: scalar
    -> (B, P, K) f32 (K = n_params)."""
    B, I, J, K = h.shape
    P = dists.shape[0]
    M = I * J
    BK = B * K

    in_dtype = jnp.bfloat16 if low_precision else jnp.float32
    itemsize = 2 if low_precision else 4

    # (B, I, J, K) -> (B*K, M): tiny array (B*K rows), transpose cost negligible.
    h_flat = jnp.transpose(h.reshape(B, M, K), (0, 2, 1)).reshape(BK, M)
    h_flat = h_flat.astype(in_dtype)

    # dists stays in its native (P, M) layout -- no wrapper transpose / extra
    # HBM pass over the dominant array.  reshape (P,I,J)->(P,M) is free.
    d_flat = dists.reshape(P, M).astype(in_dtype)

    p_tile = _choose_p_tile(P, M, BK, p_tile, itemsize, itemsize)
    grid_n = pl.cdiv(P, p_tile)
    P_pad = grid_n * p_tile
    if P_pad != P:
        # Keep every block full (unmasked lane-dense stores, deterministic
        # padded columns).  Zero-padded rows give exp(0)=1 -> finite values in
        # the padded output columns, which are sliced off below.  At production
        # sizes choose P (or p_tile) so P % p_tile == 0 to skip this copy.
        d_flat = jnp.pad(d_flat, ((0, P_pad - P), (0, 0)))

    # Fold the RBF scale: the SMEM scalar is already -0.5 / ls^2.
    scale = (-0.5 / (jnp.asarray(init_ls, jnp.float32) ** 2)).reshape(1)

    kernel = functools.partial(_gamma_gp_final_kernel, K, low_precision)

    out = pl.pallas_call(
        kernel,
        out_shape=jax.ShapeDtypeStruct((BK, P_pad), jnp.float32),
        grid_spec=pl.GridSpec(
            grid=(grid_n,),
            in_specs=[
                pl.BlockSpec(memory_space=pltpu.MemorySpace.SMEM),  # exp scale
                pl.BlockSpec((p_tile, M), lambda p: (p, 0)),        # dists tile
                pl.BlockSpec((BK, M), lambda p: (0, 0)),            # h (resident)
            ],
            out_specs=pl.BlockSpec((BK, p_tile), lambda p: (0, p)),
        ),
        compiler_params=pltpu.CompilerParams(
            dimension_semantics=("parallel",),
            vmem_limit_bytes=_vmem_limit_bytes(p_tile, M, BK, itemsize, itemsize)),
        cost_estimate=pl.CostEstimate(
            flops=2 * BK * M * P_pad,
            transcendentals=M * P_pad + 2 * BK * P_pad,
            bytes_accessed=P_pad * M * itemsize + BK * M * itemsize
                           + BK * P_pad * 4),
    )(scale, d_flat, h_flat)

    # (B*K, P_pad) -> (B, P, K)
    return jnp.transpose(out[:, :P].reshape(B, K, P), (0, 2, 1))


def _reference(h, dists, init_ls):
    """Pure-JAX reference mirroring the PyTorch module."""
    ker = jnp.exp(-0.5 * dists / (init_ls ** 2))            # (P, I, J)
    params = jnp.einsum('bijk,pij->bpk', h, ker)            # sum over (i, j)
    sig = jnp.clip(1.0 / (1.0 + jnp.exp(-params)), 1e-5, 1.0 - 1e-5)
    sp = jnp.where(jnp.exp(params) < 1000.0, jnp.log1p(jnp.exp(params)), params)
    pos = jnp.clip(0.01 + 0.9 * sp, 1e-5, 1e5)
    col = jnp.arange(params.shape[-1])
    is_sig = (col == 0) | (col == 2)
    return jnp.where(is_sig, sig, pos)


if __name__ == "__main__":
    key = jax.random.PRNGKey(0)
    k1, k2, k3 = jax.random.split(key, 3)

    # K = n_params (>= 4 so indices 0, 1, 2, 3: are all exercised),
    # P = number of off-grid target points.
    B, I, J, K = 2, 16, 16, 5
    init_ls = jnp.float32(0.5)       # deterministic "parameter" init
    h = jax.random.normal(k1, (B, I, J, K), dtype=jnp.float32)

    # Test 1: tiny P -> single grid step.
    P1 = 8
    d1 = jax.random.uniform(k2, (P1, I, J), dtype=jnp.float32) * 4.0
    out1 = jax.block_until_ready(gamma_gp_final_layer(h, d1, init_ls))
    ref1 = _reference(h, d1, init_ls)
    assert out1.shape == (B, P1, K)
    assert jnp.allclose(out1, ref1, atol=1e-4, rtol=1e-4), "mismatch (P=8)"

    # Test 2: multi-tile / padded-P path, h resident across grid steps.
    P2 = 1000
    d2 = jax.random.uniform(k3, (P2, I, J), dtype=jnp.float32) * 4.0
    out2 = jax.block_until_ready(gamma_gp_final_layer(h, d2, init_ls, p_tile=256))
    ref2 = _reference(h, d2, init_ls)
    assert out2.shape == (B, P2, K)
    assert jnp.allclose(out2, ref2, atol=1e-4, rtol=1e-4), "mismatch (P=1000)"

    print("KERNEL_OK")
</pallas_src>

<mosaic_0001>
module attributes {stable_mosaic.version = 11 : i64} {
  func.func @_gamma_gp_final_kernel(%arg0: i32, %arg1: memref<1xf32, #tpu.memory_space<smem>>, %arg2: memref<128x256xf32, #tpu.memory_space<vmem>>, %arg3: memref<10x256xf32, #tpu.memory_space<vmem>>, %arg4: memref<10x128xf32, #tpu.memory_space<vmem>>) attributes {dimension_semantics = [#tpu.dimension_semantics<parallel>], iteration_bounds = array<i64: 1>, scalar_prefetch = 0 : i64, scratch_operands = 0 : i64, tpu.core_type = #tpu.core_type<tc>, window_params = [{transform_indices = @transform_0, window_bounds = array<i64: 1>}, {transform_indices = @transform_1, window_bounds = array<i64: 128, 256>}, {pipeline_mode = #tpu.pipeline_mode<synchronous>, transform_indices = @transform_2, window_bounds = array<i64: 10, 256>}, {transform_indices = @transform_3, window_bounds = array<i64: 10, 128>}]} {
    %c0 = arith.constant 0 : index
    %0 = memref.load %arg1[%c0] : memref<1xf32, #tpu.memory_space<smem>>
    %cst = arith.constant 0.000000e+00 : f32
    %1 = vector.broadcast %cst : f32 to vector<10x128xf32>
    %c0_0 = arith.constant 0 : index
    %c0_1 = arith.constant 0 : index
    %2 = vector.load %arg4[%c0_0, %c0_1] : memref<10x128xf32, #tpu.memory_space<vmem>>, vector<10x128xf32>
    tpu.vector_store %arg4[%c0_0, %c0_1], %1 {strides = array<i32>} : memref<10x128xf32, #tpu.memory_space<vmem>>, vector<10x128xf32>,
    %c0_i32 = arith.constant 0 : i32
    %c128_i32 = arith.constant 128 : i32
    %3 = arith.muli %c0_i32, %c128_i32 : i32
    %4 = tpu.assume_multiple %3, 128 : i32
    %c0_2 = arith.constant 0 : index
    %c0_3 = arith.constant 0 : index
    %5 = vector.load %arg4[%c0_2, %c0_3] : memref<10x128xf32, #tpu.memory_space<vmem>>, vector<10x128xf32>
    %c0_4 = arith.constant 0 : index
    %6 = arith.index_cast %4 : i32 to index
    %7 = vector.load %arg2[%c0_4, %6] : memref<128x256xf32, #tpu.memory_space<vmem>>, vector<128x128xf32>
    %8 = vector.broadcast %0 : f32 to vector<128x128xf32>
    %9 = arith.mulf %7, %8 : vector<128x128xf32>
    %10 = math.exp %9 : vector<128x128xf32>
    %c0_5 = arith.constant 0 : index
    %11 = arith.index_cast %4 : i32 to index
    %12 = vector.load %arg3[%c0_5, %11] : memref<10x256xf32, #tpu.memory_space<vmem>>, vector<10x128xf32>
    %cst_6 = arith.constant dense<0.000000e+00> : vector<10x128xf32>
    %13 = tpu.matmul %12, %10, %cst_6 {dimension_numbers = #tpu.dot_dimension_numbers<[1], [1], [0], [0], [0, 0, 1, 0], [], []>} : vector<10x128xf32>, vector<128x128xf32>, vector<10x128xf32> -> vector<10x128xf32>
    %14 = arith.addf %5, %13 : vector<10x128xf32>
    %c0_7 = arith.constant 0 : index
    %c0_8 = arith.constant 0 : index
    %15 = vector.load %arg4[%c0_7, %c0_8] : memref<10x128xf32, #tpu.memory_space<vmem>>, vector<10x128xf32>
    tpu.vector_store %arg4[%c0_7, %c0_8], %14 {strides = array<i32>} : memref<10x128xf32, #tpu.memory_space<vmem>>, vector<10x128xf32>,
    %c1_i32 = arith.constant 1 : i32
    %c128_i32_9 = arith.constant 128 : i32
    %16 = arith.muli %c1_i32, %c128_i32_9 : i32
    %17 = tpu.assume_multiple %16, 128 : i32
    %c0_10 = arith.constant 0 : index
    %c0_11 = arith.constant 0 : index
    %18 = vector.load %arg4[%c0_10, %c0_11] : memref<10x128xf32, #tpu.memory_space<vmem>>, vector<10x128xf32>
    %c0_12 = arith.constant 0 : index
    %19 = arith.index_cast %17 : i32 to index
    %20 = vector.load %arg2[%c0_12, %19] : memref<128x256xf32, #tpu.memory_space<vmem>>, vector<128x128xf32>
    %21 = vector.broadcast %0 : f32 to vector<128x128xf32>
    %22 = arith.mulf %20, %21 : vector<128x128xf32>
    %23 = math.exp %22 : vector<128x128xf32>
    %c0_13 = arith.constant 0 : index
    %24 = arith.index_cast %17 : i32 to index
    %25 = vector.load %arg3[%c0_13, %24] : memref<10x256xf32, #tpu.memory_space<vmem>>, vector<10x128xf32>
    %cst_14 = arith.constant dense<0.000000e+00> : vector<10x128xf32>
    %26 = tpu.matmul %25, %23, %cst_14 {dimension_numbers = #tpu.dot_dimension_numbers<[1], [1], [0], [0], [0, 0, 1, 0], [], []>} : vector<10x128xf32>, vector<128x128xf32>, vector<10x128xf32> -> vector<10x128xf32>
    %27 = arith.addf %18, %26 : vector<10x128xf32>
    %c0_15 = arith.constant 0 : index
    %c0_16 = arith.constant 0 : index
    %28 = vector.load %arg4[%c0_15, %c0_16] : memref<10x128xf32, #tpu.memory_space<vmem>>, vector<10x128xf32>
    tpu.vector_store %arg4[%c0_15, %c0_16], %27 {strides = array<i32>} : memref<10x128xf32, #tpu.memory_space<vmem>>, vector<10x128xf32>,
    %c2_i32 = arith.constant 2 : i32
    %c0_17 = arith.constant 0 : index
    %c0_18 = arith.constant 0 : index
    %29 = vector.load %arg4[%c0_17, %c0_18] : memref<10x128xf32, #tpu.memory_space<vmem>>, vector<10x128xf32>
    %30 = tpu.iota {dimensions = array<i32: 0>} : vector<10x1xi32>
    %c5_i32 = arith.constant 5 : i32
    %c0_i32_19 = arith.constant 0 : i32
    %31 = arith.cmpi eq, %c5_i32, %c0_i32_19 : i32
    %c1_i32_20 = arith.constant 1 : i32
    %32 = arith.select %31, %c1_i32_20, %c5_i32 : i32
    %33 = vector.broadcast %32 : i32 to vector<10x1xi32>
    %34 = arith.remsi %30, %33 : vector<10x1xi32>
    %c0_i32_21 = arith.constant 0 : i32
    %35 = vector.broadcast %c0_i32_21 : i32 to vector<10x1xi32>
    %36 = arith.cmpi ne, %34, %35 : vector<10x1xi32>
    %c0_i32_22 = arith.constant 0 : i32
    %37 = vector.broadcast %c0_i32_22 : i32 to vector<10x1xi32>
    %38 = arith.cmpi slt, %34, %37 : vector<10x1xi32>
    %c0_i32_23 = arith.constant 0 : i32
    %39 = arith.cmpi slt, %32, %c0_i32_23 : i32
    %40 = vector.broadcast %39 : i1 to vector<10x1xi1>
    %41 = vector.broadcast %40 : vector<10x1xi1> to vector<10x1xi1>
    %42 = arith.xori %38, %41 : vector<10x1xi1>
    %43 = arith.andi %42, %36 : vector<10x1xi1>
    %44 = vector.broadcast %32 : i32 to vector<10x1xi32>
    %45 = arith.addi %34, %44 : vector<10x1xi32>
    %46 = arith.select %43, %45, %34 : vector<10x1xi1>, vector<10x1xi32>
    %c0_i32_24 = arith.constant 0 : i32
    %47 = vector.broadcast %c0_i32_24 : i32 to vector<10x1xi32>
    %48 = arith.cmpi eq, %46, %47 : vector<10x1xi32>
    %c2_i32_25 = arith.constant 2 : i32
    %49 = vector.broadcast %c2_i32_25 : i32 to vector<10x1xi32>
    %50 = arith.cmpi eq, %46, %49 : vector<10x1xi32>
    %51 = arith.ori %48, %50 : vector<10x1xi1>
    %cst_26 = arith.constant 0.000000e+00 : f32
    %52 = vector.broadcast %cst_26 : f32 to vector<10x128xf32>
    %53 = arith.subf %52, %29 : vector<10x128xf32>
    %54 = math.exp %53 : vector<10x128xf32>
    %cst_27 = arith.constant 1.000000e+00 : f32
    %55 = vector.broadcast %cst_27 : f32 to vector<10x128xf32>
    %56 = arith.addf %55, %54 : vector<10x128xf32>
    %cst_28 = arith.constant 1.000000e+00 : f32
    %57 = vector.broadcast %cst_28 : f32 to vector<10x128xf32>
    %58 = arith.divf %57, %56 : vector<10x128xf32>
    %cst_29 = arith.constant 9.99999974E-6 : f32
    %cst_30 = arith.constant 0.999989986 : f32
    %59 = vector.broadcast %cst_29 : f32 to vector<10x128xf32>
    %60 = arith.maximumf %59, %58 : vector<10x128xf32>
    %61 = vector.broadcast %cst_30 : f32 to vector<10x128xf32>
    %62 = arith.minimumf %61, %60 : vector<10x128xf32>
    %cst_31 = arith.constant 6.90775537 : f32
    %63 = vector.broadcast %cst_31 : f32 to vector<10x128xf32>
    %64 = arith.minimumf %29, %63 : vector<10x128xf32>
    %cst_32 = arith.constant 6.90775537 : f32
    %65 = vector.broadcast %cst_32 : f32 to vector<10x128xf32>
    %66 = arith.cmpf olt, %29, %65 : vector<10x128xf32>
    %67 = math.exp %64 : vector<10x128xf32>
    %68 = math.log1p %67 : vector<10x128xf32>
    %69 = arith.select %66, %68, %29 : vector<10x128xi1>, vector<10x128xf32>
    %cst_33 = arith.constant 0.899999976 : f32
    %70 = vector.broadcast %cst_33 : f32 to vector<10x128xf32>
    %71 = arith.mulf %70, %69 : vector<10x128xf32>
    %cst_34 = arith.constant 0.00999999977 : f32
    %72 = vector.broadcast %cst_34 : f32 to vector<10x128xf32>
    %73 = arith.addf %72, %71 : vector<10x128xf32>
    %cst_35 = arith.constant 9.99999974E-6 : f32
    %cst_36 = arith.constant 1.000000e+05 : f32
    %74 = vector.broadcast %cst_35 : f32 to vector<10x128xf32>
    %75 = arith.maximumf %74, %73 : vector<10x128xf32>
    %76 = vector.broadcast %cst_36 : f32 to vector<10x128xf32>
    %77 = arith.minimumf %76, %75 : vector<10x128xf32>
    %78 = vector.shape_cast %51 : vector<10x1xi1> to vector<10x1xi1>
    %79 = vector.broadcast %78 : vector<10x1xi1> to vector<10x128xi1>
    %80 = arith.select %79, %62, %77 : vector<10x128xi1>, vector<10x128xf32>
    %c0_37 = arith.constant 0 : index
    %c0_38 = arith.constant 0 : index
    %81 = vector.load %arg4[%c0_37, %c0_38] : memref<10x128xf32, #tpu.memory_space<vmem>>, vector<10x128xf32>
    tpu.vector_store %arg4[%c0_37, %c0_38], %80 {strides = array<i32>} : memref<10x128xf32, #tpu.memory_space<vmem>>, vector<10x128xf32>,
    return
  }
  func.func @transform_0(%arg0: i32) -> i32 {
    %c0_i32 = arith.constant 0 : i32
    %c0_i32_0 = arith.constant 0 : i32
    return %c0_i32 : i32
  }
  func.func @transform_1(%arg0: i32) -> (i32, i32) {
    %c0_i32 = arith.constant 0 : i32
    %c0_i32_0 = arith.constant 0 : i32
    return %arg0, %c0_i32 : i32, i32
  }
  func.func @transform_2(%arg0: i32) -> (i32, i32) {
    %c0_i32 = arith.constant 0 : i32
    %c0_i32_0 = arith.constant 0 : i32
    %c0_i32_1 = arith.constant 0 : i32
    return %c0_i32, %c0_i32_0 : i32, i32
  }
  func.func @transform_3(%arg0: i32) -> (i32, i32) {
    %c0_i32 = arith.constant 0 : i32
    %c0_i32_0 = arith.constant 0 : i32
    return %c0_i32, %arg0 : i32, i32
  }
}

</mosaic_0001>

<llo_original>
// kernel: tpu_custom_call.1
$region0: #{tpu_custom_call.1}
  #allocation0 [shape = 'u32[]', space=smem, size = 0x4, offset = 0x4, fixed_abs, tag = 'smem constant byte address 0x4 - core index']
  #allocation1 [shape = 'u32[144,128]{1,0:T(1,128)}', space=vmem, size = 0x12000, scoped, tag = 'internal scratch']
  #allocation2 [shape = 'f32[1]{0:T(128)S(6)}', space=smem, size = 0x200, scoped, tag = 'scoped memory for tpu_custom_call.1']
  %s0 = inlined_call_operand.<no memory space> [shape: f32[1], index: 0, kind: input, shape index: {}]
  %s1 = inlined_call_operand.hbm [shape: f32[128,256], index: 1, kind: input, shape index: {}]
  %s2 = inlined_call_operand.hbm [shape: f32[10,256], index: 2, kind: input, shape index: {}]
  %s3 = inlined_call_operand.hbm [shape: f32[10,128], index: 3, kind: output, shape index: {}]
  %s4 = sld [smem:[#allocation0]]
  $region30: #{tpu_custom_call.1} parent=0
    _
  %s6 = ssub.s32 1, %s4
  %s7 = scalar_select 0, %s6, %s4
  %8 = sst [smem:[#allocation2]] %s0
  $region1: #{tpu_custom_call.1} parent=0
    #allocation3 [shape = 'u8[131072]{0}', space=vmem, size = 0x20000, scoped, tag = 'input window, operand 1, single buffered']
    #allocation4 [shape = 's32[1]{0}', space=sflag, size = 0x4, scoped, tag = 'scoped memory for tpu_custom_call.1']
    #allocation5 [shape = 's32[1]{0}', space=sflag, size = 0x4, scoped, tag = 'scoped memory for tpu_custom_call.1']
    #allocation6 [shape = 'u8[16384]{0}', space=vmem, size = 0x4000, scoped, tag = 'input window, operand 2, single buffered']
    #allocation7 [shape = 's32[1]{0}', space=sflag, size = 0x4, scoped, tag = 'scoped memory for tpu_custom_call.1']
    #allocation8 [shape = 'u8[8192]{0}', space=vmem, size = 0x2000, scoped, tag = 'output window, operand 0, single buffered']
    %9 = vsyncpa [#allocation4], 0
    %10 = vsyncpa [#allocation7], 0
    %11 = vsyncpa [#allocation5], 0
    // Predicated region
    $region2: #{tpu_custom_call.1} parent=1 // pred_check
      _
    $region3: #{tpu_custom_call.1} parent=1 // pred_check_branch
      %13 = sbr.rel (0) target = $region5
    $region4: #{tpu_custom_call.1} parent=1 // pred_region
      _
    $region5: #{tpu_custom_call.1} parent=1 // pred_fallthru
      _
    // Predicated region
    $region6: #{tpu_custom_call.1} parent=1 // pred_check
      _
    $region7: #{tpu_custom_call.1} parent=1 // pred_check_branch
      %15 = sbr.rel (0) target = $region9
    $region8: #{tpu_custom_call.1} parent=1 // pred_region
      %s17 = ssub.s32 4096, 4096
      %18 = vsyncadd [#allocation4], %s17
      %s19 = sshll.u32 [#allocation3], 4
      %s20 = int_to_ptr.vmem [resolvable:$true] %s19
      %25 = dma.hbm_to_vmem [thread:$0]  %s1, 4096, %s20, [#allocation4], 256, 256, 16
    $region9: #{tpu_custom_call.1} parent=1 // pred_fallthru
      _
    // Predicated region
    $region10: #{tpu_custom_call.1} parent=1 // pred_check
      _
    $region11: #{tpu_custom_call.1} parent=1 // pred_check_branch
      %27 = sbr.rel (0) target = $region13
    $region12: #{tpu_custom_call.1} parent=1 // pred_region
      %s29 = ssub.s32 512, 512
      %30 = vsyncadd [#allocation7], %s29
      %s31 = sshll.u32 [#allocation6], 4
      %s32 = int_to_ptr.vmem [resolvable:$true] %s31
      %37 = dma.hbm_to_vmem [thread:$0]  %s2, 512, %s32, [#allocation7], 256, 256, 16
    $region13: #{tpu_custom_call.1} parent=1 // pred_fallthru
      _
    // Predicated region
    $region14: #{tpu_custom_call.1} parent=1 // pred_check
      _
    $region15: #{tpu_custom_call.1} parent=1 // pred_check_branch
      %39 = sbr.rel (0) target = $region17
    $region16: #{tpu_custom_call.1} parent=1 // pred_region
      %40 = dma.done [#allocation4], 4096
    $region17: #{tpu_custom_call.1} parent=1 // pred_fallthru
      _
    // Predicated region
    $region18: #{tpu_custom_call.1} parent=1 // pred_check
      _
    $region19: #{tpu_custom_call.1} parent=1 // pred_check_branch
      %42 = sbr.rel (0) target = $region21
    $region20: #{tpu_custom_call.1} parent=1 // pred_region
      %43 = dma.done [#allocation7], 512
    $region21: #{tpu_custom_call.1} parent=1 // pred_fallthru
      _
    %s44 = sld [smem:[#allocation2]]
    %45 = vst [vmem:[#allocation8] sm:$0xff] 0.0
    %46 = vst [vmem:[#allocation8 + $0x8] sm:$0x3] 0.0
    %v47 = vld [vmem:[#allocation8] sm:$0xff]
    %v48 = vld [vmem:[#allocation8 + $0x8] sm:$0x3]
    %v49 = vld [vmem:[#allocation3] sm:$0xff]
    %v50 = vld [vmem:[#allocation3 + $0x10] sm:$0xff]
    %v51 = vld [vmem:[#allocation3 + $0x20] sm:$0xff]
    %v52 = vld [vmem:[#allocation3 + $0x30] sm:$0xff]
    %v53 = vld [vmem:[#allocation3 + $0x40] sm:$0xff]
    %v54 = vld [vmem:[#allocation3 + $0x50] sm:$0xff]
    %v55 = vld [vmem:[#allocation3 + $0x60] sm:$0xff]
    %v56 = vld [vmem:[#allocation3 + $0x70] sm:$0xff]
    %v57 = vld [vmem:[#allocation3 + $0x80] sm:$0xff]
    %v58 = vld [vmem:[#allocation3 + $0x90] sm:$0xff]
    %v59 = vld [vmem:[#allocation3 + $0xa0] sm:$0xff]
    %v60 = vld [vmem:[#allocation3 + $0xb0] sm:$0xff]
    %v61 = vld [vmem:[#allocation3 + $0xc0] sm:$0xff]
    %v62 = vld [vmem:[#allocation3 + $0xd0] sm:$0xff]
    %v63 = vld [vmem:[#allocation3 + $0xe0] sm:$0xff]
    %v64 = vld [vmem:[#allocation3 + $0xf0] sm:$0xff]
    %v65 = vstv %s44
    %v66 = vmul.f32 %v49, %v65
    %v67 = vmul.f32 %v50, %v65
    %v68 = vmul.f32 %v51, %v65
    %v69 = vmul.f32 %v52, %v65
    %v70 = vmul.f32 %v53, %v65
    %v71 = vmul.f32 %v54, %v65
    %v72 = vmul.f32 %v55, %v65
    %v73 = vmul.f32 %v56, %v65
    %v74 = vmul.f32 %v57, %v65
    %v75 = vmul.f32 %v58, %v65
    %v76 = vmul.f32 %v59, %v65
    %v77 = vmul.f32 %v60, %v65
    %v78 = vmul.f32 %v61, %v65
    %v79 = vmul.f32 %v62, %v65
    %v80 = vmul.f32 %v63, %v65
    %v81 = vmul.f32 %v64, %v65
    %v82 = vmul.f32 %v66, 1.442695
    %v83 = vpow.pop %v82
    %v84 = vmul.f32 %v67, 1.442695
    %v85 = vpow.pop %v84
    %v86 = vmul.f32 %v68, 1.442695
    %v87 = vpow.pop %v86
    %v88 = vmul.f32 %v69, 1.442695
    %v89 = vpow.pop %v88
    %v90 = vmul.f32 %v70, 1.442695
    %v91 = vpow.pop %v90
    %v92 = vmul.f32 %v71, 1.442695
    %v93 = vpow.pop %v92
    %v94 = vmul.f32 %v72, 1.442695
    %v95 = vpow.pop %v94
    %v96 = vmul.f32 %v73, 1.442695
    %v97 = vpow.pop %v96
    %v98 = vmul.f32 %v74, 1.442695
    %v99 = vpow.pop %v98
    %v100 = vmul.f32 %v75, 1.442695
    %v101 = vpow.pop %v100
    %v102 = vmul.f32 %v76, 1.442695
    %v103 = vpow.pop %v102
    %v104 = vmul.f32 %v77, 1.442695
    %v105 = vpow.pop %v104
    %v106 = vmul.f32 %v78, 1.442695
    %v107 = vpow.pop %v106
    %v108 = vmul.f32 %v79, 1.442695
    %v109 = vpow.pop %v108
    %v110 = vmul.f32 %v80, 1.442695
    %v111 = vpow.pop %v110
    %v112 = vmul.f32 %v81, 1.442695
    %v113 = vpow.pop %v112
    %v114 = vld [vmem:[#allocation6] sm:$0xff]
    %v115 = vld [vmem:[#allocation6 + $0x10] sm:$0x3]
    %116 = vmatprep.subr.mxu0 0.0
    %117 = vmatpush1.xpose.msra.mxu0 %v113
    %118 = vmatprep.subr.mxu0 0.0
    %119 = vmatpush1.xpose.msra.mxu0 %v111
    %120 = vmatprep.subr.mxu0 0.0
    %121 = vmatpush1.xpose.msra.mxu0 %v109
    %122 = vmatprep.subr.mxu0 0.0
    %123 = vmatpush1.xpose.msra.mxu0 %v107
    %124 = vmatprep.subr.mxu0 0.0
    %125 = vmatpush1.xpose.msra.mxu0 %v105
    %126 = vmatprep.subr.mxu0 0.0
    %127 = vmatpush1.xpose.msra.mxu0 %v103
    %128 = vmatprep.subr.mxu0 0.0
    %129 = vmatpush1.xpose.msra.mxu0 %v101
    %130 = vmatprep.subr.mxu0 0.0
    %131 = vmatpush1.xpose.msra.mxu0 %v99
    %132 = vmatprep.subr.mxu0 0.0
    %133 = vmatpush1.xpose.msra.mxu0 %v97
    %134 = vmatprep.subr.mxu0 0.0
    %135 = vmatpush1.xpose.msra.mxu0 %v95
    %136 = vmatprep.subr.mxu0 0.0
    %137 = vmatpush1.xpose.msra.mxu0 %v93
    %138 = vmatprep.subr.mxu0 0.0
    %139 = vmatpush1.xpose.msra.mxu0 %v91
    %140 = vmatprep.subr.mxu0 0.0
    %141 = vmatpush1.xpose.msra.mxu0 %v89
    %142 = vmatprep.subr.mxu0 0.0
    %143 = vmatpush1.xpose.msra.mxu0 %v87
    %144 = vmatprep.subr.mxu0 0.0
    %145 = vmatpush1.xpose.msra.mxu0 %v85
    %146 = vmatprep.subr.mxu0 0.0
    %147 = vmatpush1.xpose.msra.mxu0 %v83
    %148 = vmatprep.subr.mxu0 0.0
    %149 = vmatpush2.xpose.msra.mxu0 0.0
    %150 = vmatprep.subr.mxu0 0.0
    %151 = vmatpush2.xpose.msra.mxu0 0.0
    %152 = vmatprep.subr.mxu0 0.0
    %153 = vmatpush2.xpose.msra.mxu0 0.0
    %154 = vmatprep.subr.mxu0 0.0
    %155 = vmatpush2.xpose.msra.mxu0 0.0
    %156 = vmatprep.subr.mxu0 0.0
    %157 = vmatpush2.xpose.msra.mxu0 0.0
    %158 = vmatprep.subr.mxu0 0.0
    %159 = vmatpush2.xpose.msra.mxu0 0.0
    %160 = vmatprep.subr.mxu0 0.0
    %161 = vmatpush2.xpose.msra.mxu0 0.0
    %162 = vmatprep.subr.mxu0 0.0
    %163 = vmatpush2.xpose.msra.mxu0 0.0
    %164 = vmatprep.subr.mxu0 0.0
    %165 = vmatpush2.xpose.msra.mxu0 0.0
    %166 = vmatprep.subr.mxu0 0.0
    %167 = vmatpush2.xpose.msra.mxu0 0.0
    %168 = vmatprep.subr.mxu0 0.0
    %169 = vmatpush2.xpose.msra.mxu0 0.0
    %170 = vmatprep.subr.mxu0 0.0
    %171 = vmatpush2.xpose.msra.mxu0 0.0
    %172 = vmatprep.subr.mxu0 0.0
    %173 = vmatpush2.xpose.msra.mxu0 0.0
    %174 = vmatprep.subr.mxu0 0.0
    %175 = vmatpush2.xpose.msra.mxu0 0.0
    %176 = vmatprep.subr.mxu0 0.0
    %177 = vmatpush2.xpose.msra.mxu0 0.0
    %178 = vmatprep.subr.mxu0 0.0
    %179 = vmatpush2.xpose.msra.mxu0 0.0
    %180 = vmatprep.mubr.f32.mxu0 0.0
    %181 = vmatmul.mubr.f32.gmra.mxu0 %v114
    %v182 = vpop.f32.mrf.mxu0
    %v183 = vadd.f32 0.0, %v182
    %v184 = vpop.f32.mrf.mxu0
    %185 = vmatprep.mubr.f32.mxu0 0.0
    %186 = vmatmul.mubr.f32.gmra.mxu0 %v115
    %v187 = vpop.f32.mrf.mxu0
    %v188 = vadd.f32 0.0, %v187
    %v189 = vpop.f32.mrf.mxu0
    %190 = vdwg.mxu0
    %v191 = vadd.f32 %v47, %v183
    %v192 = vadd.f32 %v48, %v188
    %193 = vst [vmem:[#allocation8] sm:$0xff] %v191
    %194 = vst [vmem:[#allocation8 + $0x8] sm:$0x3] %v192
    %v195 = vld [vmem:[#allocation8] sm:$0xff]
    %v196 = vld [vmem:[#allocation8 + $0x8] sm:$0x3]
    %s197 = scalar_lea.vmem [#allocation3], 8
    %v198 = vld [vmem:[%s197] sm:$0xff]
    %v199 = vld [vmem:[%s197 + $0x10] sm:$0xff]
    %v200 = vld [vmem:[%s197 + $0x20] sm:$0xff]
    %v201 = vld [vmem:[%s197 + $0x30] sm:$0xff]
    %v202 = vld [vmem:[%s197 + $0x40] sm:$0xff]
    %v203 = vld [vmem:[%s197 + $0x50] sm:$0xff]
    %v204 = vld [vmem:[%s197 + $0x60] sm:$0xff]
    %v205 = vld [vmem:[%s197 + $0x70] sm:$0xff]
    %v206 = vld [vmem:[%s197 + $0x80] sm:$0xff]
    %v207 = vld [vmem:[%s197 + $0x90] sm:$0xff]
    %v208 = vld [vmem:[%s197 + $0xa0] sm:$0xff]
    %v209 = vld [vmem:[%s197 + $0xb0] sm:$0xff]
    %v210 = vld [vmem:[%s197 + $0xc0] sm:$0xff]
    %v211 = vld [vmem:[%s197 + $0xd0] sm:$0xff]
    %v212 = vld [vmem:[%s197 + $0xe0] sm:$0xff]
    %v213 = vld [vmem:[%s197 + $0xf0] sm:$0xff]
    %v214 = vmul.f32 %v198, %v65
    %v215 = vmul.f32 %v199, %v65
    %v216 = vmul.f32 %v200, %v65
    %v217 = vmul.f32 %v201, %v65
    %v218 = vmul.f32 %v202, %v65
    %v219 = vmul.f32 %v203, %v65
    %v220 = vmul.f32 %v204, %v65
    %v221 = vmul.f32 %v205, %v65
    %v222 = vmul.f32 %v206, %v65
    %v223 = vmul.f32 %v207, %v65
    %v224 = vmul.f32 %v208, %v65
    %v225 = vmul.f32 %v209, %v65
    %v226 = vmul.f32 %v210, %v65
    %v227 = vmul.f32 %v211, %v65
    %v228 = vmul.f32 %v212, %v65
    %v229 = vmul.f32 %v213, %v65
    %v230 = vmul.f32 %v214, 1.442695
    %v231 = vpow.pop %v230
    %v232 = vmul.f32 %v215, 1.442695
    %v233 = vpow.pop %v232
    %v234 = vmul.f32 %v216, 1.442695
    %v235 = vpow.pop %v234
    %v236 = vmul.f32 %v217, 1.442695
    %v237 = vpow.pop %v236
    %v238 = vmul.f32 %v218, 1.442695
    %v239 = vpow.pop %v238
    %v240 = vmul.f32 %v219, 1.442695
    %v241 = vpow.pop %v240
    %v242 = vmul.f32 %v220, 1.442695
    %v243 = vpow.pop %v242
    %v244 = vmul.f32 %v221, 1.442695
    %v245 = vpow.pop %v244
    %v246 = vmul.f32 %v222, 1.442695
    %v247 = vpow.pop %v246
    %v248 = vmul.f32 %v223, 1.442695
    %v249 = vpow.pop %v248
    %v250 = vmul.f32 %v224, 1.442695
    %v251 = vpow.pop %v250
    %v252 = vmul.f32 %v225, 1.442695
    %v253 = vpow.pop %v252
    %v254 = vmul.f32 %v226, 1.442695
    %v255 = vpow.pop %v254
    %v256 = vmul.f32 %v227, 1.442695
    %v257 = vpow.pop %v256
    %v258 = vmul.f32 %v228, 1.442695
    %v259 = vpow.pop %v258
    %v260 = vmul.f32 %v229, 1.442695
    %v261 = vpow.pop %v260
    %s262 = scalar_lea.vmem [#allocation6], 8
    %v263 = vld [vmem:[%s262] sm:$0xff]
    %v264 = vld [vmem:[%s262 + $0x10] sm:$0x3]
    %265 = vmatprep.subr.mxu0 0.0
    %266 = vmatpush1.xpose.msra.mxu0 %v261
    %267 = vmatprep.subr.mxu0 0.0
    %268 = vmatpush1.xpose.msra.mxu0 %v259
    %269 = vmatprep.subr.mxu0 0.0
    %270 = vmatpush1.xpose.msra.mxu0 %v257
    %271 = vmatprep.subr.mxu0 0.0
    %272 = vmatpush1.xpose.msra.mxu0 %v255
    %273 = vmatprep.subr.mxu0 0.0
    %274 = vmatpush1.xpose.msra.mxu0 %v253
    %275 = vmatprep.subr.mxu0 0.0
    %276 = vmatpush1.xpose.msra.mxu0 %v251
    %277 = vmatprep.subr.mxu0 0.0
    %278 = vmatpush1.xpose.msra.mxu0 %v249
    %279 = vmatprep.subr.mxu0 0.0
    %280 = vmatpush1.xpose.msra.mxu0 %v247
    %281 = vmatprep.subr.mxu0 0.0
    %282 = vmatpush1.xpose.msra.mxu0 %v245
    %283 = vmatprep.subr.mxu0 0.0
    %284 = vmatpush1.xpose.msra.mxu0 %v243
    %285 = vmatprep.subr.mxu0 0.0
    %286 = vmatpush1.xpose.msra.mxu0 %v241
    %287 = vmatprep.subr.mxu0 0.0
    %288 = vmatpush1.xpose.msra.mxu0 %v239
    %289 = vmatprep.subr.mxu0 0.0
    %290 = vmatpush1.xpose.msra.mxu0 %v237
    %291 = vmatprep.subr.mxu0 0.0
    %292 = vmatpush1.xpose.msra.mxu0 %v235
    %293 = vmatprep.subr.mxu0 0.0
    %294 = vmatpush1.xpose.msra.mxu0 %v233
    %295 = vmatprep.subr.mxu0 0.0
    %296 = vmatpush1.xpose.msra.mxu0 %v231
    %297 = vmatprep.subr.mxu0 0.0
    %298 = vmatpush2.xpose.msra.mxu0 0.0
    %299 = vmatprep.subr.mxu0 0.0
    %300 = vmatpush2.xpose.msra.mxu0 0.0
    %301 = vmatprep.subr.mxu0 0.0
    %302 = vmatpush2.xpose.msra.mxu0 0.0
    %303 = vmatprep.subr.mxu0 0.0
    %304 = vmatpush2.xpose.msra.mxu0 0.0
    %305 = vmatprep.subr.mxu0 0.0
    %306 = vmatpush2.xpose.msra.mxu0 0.0
    %307 = vmatprep.subr.mxu0 0.0
    %308 = vmatpush2.xpose.msra.mxu0 0.0
    %309 = vmatprep.subr.mxu0 0.0
    %310 = vmatpush2.xpose.msra.mxu0 0.0
    %311 = vmatprep.subr.mxu0 0.0
    %312 = vmatpush2.xpose.msra.mxu0 0.0
    %313 = vmatprep.subr.mxu0 0.0
    %314 = vmatpush2.xpose.msra.mxu0 0.0
    %315 = vmatprep.subr.mxu0 0.0
    %316 = vmatpush2.xpose.msra.mxu0 0.0
    %317 = vmatprep.subr.mxu0 0.0
    %318 = vmatpush2.xpose.msra.mxu0 0.0
    %319 = vmatprep.subr.mxu0 0.0
    %320 = vmatpush2.xpose.msra.mxu0 0.0
    %321 = vmatprep.subr.mxu0 0.0
    %322 = vmatpush2.xpose.msra.mxu0 0.0
    %323 = vmatprep.subr.mxu0 0.0
    %324 = vmatpush2.xpose.msra.mxu0 0.0
    %325 = vmatprep.subr.mxu0 0.0
    %326 = vmatpush2.xpose.msra.mxu0 0.0
    %327 = vmatprep.subr.mxu0 0.0
    %328 = vmatpush2.xpose.msra.mxu0 0.0
    %329 = vmatprep.mubr.f32.mxu0 0.0
    %330 = vmatmul.mubr.f32.gmra.mxu0 %v263
    %v331 = vpop.f32.mrf.mxu0
    %v332 = vadd.f32 0.0, %v331
    %v333 = vpop.f32.mrf.mxu0
    %334 = vmatprep.mubr.f32.mxu0 0.0
    %335 = vmatmul.mubr.f32.gmra.mxu0 %v264
    %v336 = vpop.f32.mrf.mxu0
    %v337 = vadd.f32 0.0, %v336
    %v338 = vpop.f32.mrf.mxu0
    %339 = vdwg.mxu0
    %v340 = vadd.f32 %v195, %v332
    %v341 = vadd.f32 %v196, %v337
    %342 = vst [vmem:[#allocation8] sm:$0xff] %v340
    %343 = vst [vmem:[#allocation8 + $0x8] sm:$0x3] %v341
    %v344 = vld [vmem:[#allocation8] sm:$0xff]
    %v345 = vld [vmem:[#allocation8 + $0x8] sm:$0x3]
    %v346 = vlaneseq
    %v347 = vshrl.u32 %v346, 7
    %v348 = vadd.s32 %v347, 8
    %vm349 = vcmp.lt.s32.totalorder %v347, 0
    %v350 = vsub.s32 0, %v347
    %v351 = vsel %vm349, %v350, %v347
    %v352 = vmul.u32.u64.compose %v351, 3435973837
    %v353 = vextract.low.u32 %v352
    %v354 = vextract.high.u32 %v352
    %v355 = vshrl.u32 %v354, 2
    %v356 = vmul.u32 %v355, 5
    %v357 = vsub.s32 %v351, %v356
    %v358 = vsub.s32 0, %v357
    %v359 = vsel %vm349, %v358, %v357
    %vm360 = vcmp.lt.s32.totalorder %v348, 0
    %v361 = vsub.s32 0, %v348
    %v362 = vsel %vm360, %v361, %v348
    %v363 = vmul.u32.u64.compose %v362, 3435973837
    %v364 = vextract.low.u32 %v363
    %v365 = vextract.high.u32 %v363
    %v366 = vshrl.u32 %v365, 2
    %v367 = vmul.u32 %v366, 5
    %v368 = vsub.s32 %v362, %v367
    %v369 = vsub.s32 0, %v368
    %v370 = vsel %vm360, %v369, %v368
    %vm371 = vcmp.ne.s32.totalorder %v359, 0
    %vm372 = vcmp.ne.s32.totalorder %v370, 0
    %vm373 = vcmp.lt.s32.totalorder %v359, 0
    %vm374 = vcmp.lt.s32.totalorder %v370, 0
    %vm375 = vmand %vm373, %vm371
    %vm376 = vmand %vm374, %vm372
    %v377 = vadd.s32 %v359, 5
    %v378 = vadd.s32 %v370, 5
    %v379 = vsel %vm375, %v377, %v359
    %v380 = vsel %vm376, %v378, %v370
    %vm381 = vcmp.eq.s32.totalorder %v379, 0
    %vm382 = vcmp.eq.s32.totalorder %v380, 0
    %vm383 = vcmp.eq.s32.totalorder %v379, 2
    %vm384 = vcmp.eq.s32.totalorder %v380, 2
    %vm385 = vmor %vm381, %vm383
    %vm386 = vmor %vm382, %vm384
    %v387 = vsub.f32 0.0, %v344
    %v388 = vsub.f32 0.0, %v345
    %v389 = vmul.f32 %v387, 1.442695
    %v390 = vpow.pop %v389
    %v391 = vmul.f32 %v388, 1.442695
    %v392 = vpow.pop %v391
    %v393 = vadd.f32 %v390, 1.0
    %v394 = vadd.f32 %v392, 1.0
    %v395 = vrcp.pop %v393
    %v396 = vmul.f32 1.0, %v395
    %v397 = vrcp.pop %v394
    %v398 = vmul.f32 1.0, %v397
    %v399 = vmax.f32 %v396, 1e-05
    %v400 = vmax.f32 %v398, 1e-05
    %v401 = vmin.f32 %v399, 0.99999
    %v402 = vmin.f32 %v400, 0.99999
    %v403 = vmin.f32 %v344, 6.9077554
    %v404 = vmin.f32 %v345, 6.9077554
    %vm405 = vcmp.lt.f32.partialorder %v344, 6.9077554
    %vm406 = vcmp.lt.f32.partialorder %v345, 6.9077554
    %v407 = vmul.f32 %v403, 1.442695
    %v408 = vpow.pop %v407
    %v409 = vmul.f32 %v404, 1.442695
    %v410 = vpow.pop %v409
    %v411 = vadd.f32 %v408, 1.0
    %v412 = vlog2.pop %v411
    %v413 = vmul.f32 %v412, 0.6931472
    %v414 = vmul.f32 -0.5, %v408
    %v415 = vadd.f32 %v414, 1.0
    %v416 = vmul.f32 %v415, %v408
    %v417 = vand.u32 2147483647, %v408
    %vm418 = vcmp.lt.f32.partialorder %v417, 0.0004427343
    %v419 = vsel %vm418, %v416, %v413
    %v420 = vadd.f32 %v410, 1.0
    %v421 = vlog2.pop %v420
    %v422 = vmul.f32 %v421, 0.6931472
    %v423 = vmul.f32 -0.5, %v410
    %v424 = vadd.f32 %v423, 1.0
    %v425 = vmul.f32 %v424, %v410
    %v426 = vand.u32 2147483647, %v410
    %vm427 = vcmp.lt.f32.partialorder %v426, 0.0004427343
    %v428 = vsel %vm427, %v425, %v422
    %v429 = vsel %vm405, %v419, %v344
    %v430 = vsel %vm406, %v428, %v345
    %v431 = vmul.f32 %v429, 0.9
    %v432 = vmul.f32 %v430, 0.9
    %v433 = vadd.f32 %v431, 0.01
    %v434 = vadd.f32 %v432, 0.01
    %v435 = vmax.f32 %v433, 1e-05
    %v436 = vmax.f32 %v434, 1e-05
    %v437 = vmin.f32 %v435, 100000.0
    %v438 = vmin.f32 %v436, 100000.0
    %v439 = vsel %vm385, 1, 0
    %v440 = vsel %vm386, 1, 0
    %vm441 = vcmp.eq.s32.totalorder %v439, 1
    %vm442 = vcmp.eq.s32.totalorder %v440, 1
    %v443 = vsel %vm441, %v401, %v437
    %v444 = vsel %vm442, %v402, %v438
    %445 = vst [vmem:[#allocation8] sm:$0xff] %v443
    %446 = vst [vmem:[#allocation8 + $0x8] sm:$0x3] %v444
    // Predicated region
    $region22: #{tpu_custom_call.1} parent=1 // pred_check
      _
    $region23: #{tpu_custom_call.1} parent=1 // pred_check_branch
      %448 = sbr.rel (0) target = $region25
    $region24: #{tpu_custom_call.1} parent=1 // pred_region
      %s450 = ssub.s32 256, 256
      %451 = vsyncadd [#allocation5], %s450
      %s452 = sshll.u32 [#allocation8], 4
      %s453 = int_to_ptr.vmem [resolvable:$true] %s452
      %458 = dma.vmem_to_hbm [thread:$0]  %s453, 256, %s3, [#allocation5], 128, 128, 8
    $region25: #{tpu_custom_call.1} parent=1 // pred_fallthru
      _
    // Predicated region
    $region26: #{tpu_custom_call.1} parent=1 // pred_check
      _
    $region27: #{tpu_custom_call.1} parent=1 // pred_check_branch
      %460 = sbr.rel (0) target = $region29
    $region28: #{tpu_custom_call.1} parent=1 // pred_region
      %461 = dma.done [#allocation5], 256
    $region29: #{tpu_custom_call.1} parent=1 // pred_fallthru
      _
    %462 = vsyncpa [#allocation4], 1
    %463 = vsyncpa [#allocation7], 1
    %464 = vsyncpa [#allocation5], 1

</llo_original>
